<compile_context>
chip_gen: v6e
topology: v6e:2x2x1
jax: 0.10.0
libtpu: 0.0.40
codegen_flags: <defaults>
</compile_context>

<pallas_src>
import math
import numpy as np
import jax
import jax.numpy as jnp
from jax import lax
from jax.experimental import pallas as pl
from jax.experimental.pallas import tpu as pltpu

# ----------------------------- model configuration -----------------------------
HIDDEN_SIZE = 32                           # args.hidden_size == first_linear_dim (encoder output)
NUM_QUBITS = int(math.log2(HIDDEN_SIZE))   # 5
QNN_LAYERS = 2                             # args.qnn_layer
FFN_HIDDEN = 32                            # args.ffn_hidden_size  (ffn_num_layers == 3)
OUTPUT_SIZE = 8                            # args.output_size
OUT_PAD = 128                              # lane-dense padded output width
NR0, NR1 = 0, OUTPUT_SIZE                  # args.norm_range
BATCH = 128                                # molecules per forward call (example)
EPS = 1e-12
# classification=False, multiclass=False, output_activation='exp', activation='ReLU'


# ----------------------- quantum circuit unitary (param setup) -----------------------
def _rx(theta):
    c, s = np.cos(theta / 2.0), np.sin(theta / 2.0)
    return np.array([[c, -1j * s], [-1j * s, c]], dtype=np.complex128)


_I2 = np.eye(2, dtype=np.complex128)
_X = np.array([[0, 1], [1, 0]], dtype=np.complex128)
_P0 = np.array([[1, 0], [0, 0]], dtype=np.complex128)
_P1 = np.array([[0, 0], [0, 1]], dtype=np.complex128)


def _embed(ops, n):
    # wire 0 is the most-significant qubit (PennyLane convention)
    m = np.array([[1.0 + 0j]])
    for q in range(n):
        m = np.kron(m, ops.get(q, _I2))
    return m


def basic_entangler_unitary(weights):
    """Full unitary of qml.BasicEntanglerLayers(weights) (RX rotations + CNOT ring)."""
    layers, n = weights.shape
    u = np.eye(2 ** n, dtype=np.complex128)
    for l in range(layers):
        for q in range(n):                       # RX layer (commuting single-qubit gates)
            u = _embed({q: _rx(weights[l, q])}, n) @ u
        if n > 1:                                # CNOT ring
            pairs = [(0, 1)] if n == 2 else [(q, (q + 1) % n) for q in range(n)]
            for c, t in pairs:
                cnot = _embed({c: _P0}, n) + _embed({c: _P1, t: _X}, n)
                u = cnot @ u
    return u


# --------------------------------- Pallas kernel ---------------------------------
def molecule_ffn_kernel(x_ref, uriT_ref, w1s_ref, b1_ref, w2_ref, b2_ref, out_ref):
    x = x_ref[...]                                             # [TB, H]  encoder embedding tile

    # qnn_layer: AmplitudeEmbedding(normalize=True)  (rsqrt -> EUP slot, eps guards zero rows)
    xh = x * lax.rsqrt(jnp.sum(x * x, axis=-1, keepdims=True) + EPS)

    # BasicEntanglerLayers as a fixed complex unitary, real/imag fused into one dot:
    # psi = U @ xh  (batched: xh @ [Ur^T | Ui^T])  -> p = [TB, 2H]
    p = jnp.dot(xh, uriT_ref[...], preferred_element_type=jnp.float32)

    # qml.probs (pr^2 + pi^2) fused with Linear(H, FFN) via duplicated w1:
    # (p*p) @ [[w1],[w1]] == (pr^2 + pi^2) @ w1  -- no lane-offset-32 slices.
    h = jnp.dot(p * p, w1s_ref[...], preferred_element_type=jnp.float32) + b1_ref[...]
    h = jnp.maximum(h, 0.0)                                    # ReLU; Dropout is identity in eval

    # Linear(ffn_hidden_size, output_size) with lane-dense (zero-padded to 128) weights.
    logits = jnp.dot(h, w2_ref[...], preferred_element_type=jnp.float32) + b2_ref[...]

    # output_activation == 'exp' followed by range-sum normalization.
    # Row-max subtraction is exact (cancels in numerator and denominator) and prevents
    # f32 overflow of exp for large logits.  Padded columns have logit 0 and never leak
    # into the range sum (masked to [NR0, NR1)).
    m = jnp.max(logits, axis=1, keepdims=True)
    y = jnp.exp(logits - m)

    lane = lax.broadcasted_iota(jnp.int32, y.shape, 1)
    in_range = (lane >= NR0) & (lane < NR1)
    norm_sum = jnp.sum(jnp.where(in_range, y, 0.0), axis=1, keepdims=True)
    out_ref[...] = y * pl.reciprocal(norm_sum, approx=True)


def _preferred_num_batch_tiles():
    # v7x has 2 TensorCores per chip: split the batch across both via a 2-step
    # "parallel" grid.  v5e/v6e are single-TC, so one grid step minimizes the
    # ~0.35 us/step fixed overhead that dominates this tiny kernel.
    try:
        kind = jax.devices()[0].device_kind.lower()
    except Exception:
        kind = ""
    return 2 if ("v7" in kind or "7x" in kind) else 1


def molecule_model_forward(x, uriT, w1_stacked, b1, w2_pad, b2_pad, *, num_tiles=None):
    """x: [B, HIDDEN_SIZE] encoder embeddings -> [B, OUTPUT_SIZE] normalized spectra."""
    b = x.shape[0]
    if num_tiles is None:
        num_tiles = _preferred_num_batch_tiles()
    if num_tiles > 1 and b % (8 * num_tiles) == 0:
        tile_b = b // num_tiles          # even split, multiple of 8 sublanes (v7x: both TCs)
    else:
        tile_b = b                       # single full-array tile (always layout-legal, no padding copy)
    n_tiles = b // tile_b

    const = lambda i: (0, 0)  # weights: one block, VMEM-resident across the whole grid
    out = pl.pallas_call(
        molecule_ffn_kernel,
        out_shape=jax.ShapeDtypeStruct((b, OUT_PAD), jnp.float32),
        grid_spec=pltpu.PrefetchScalarGridSpec(
            num_scalar_prefetch=0,
            grid=(n_tiles,),
            in_specs=[
                pl.BlockSpec((tile_b, HIDDEN_SIZE), lambda i: (i, 0)),       # x tile
                pl.BlockSpec((HIDDEN_SIZE, 2 * HIDDEN_SIZE), const),         # [Ur^T | Ui^T]
                pl.BlockSpec((2 * HIDDEN_SIZE, FFN_HIDDEN), const),          # [[w1],[w1]]
                pl.BlockSpec((1, FFN_HIDDEN), const),                        # b1
                pl.BlockSpec((FFN_HIDDEN, OUT_PAD), const),                  # w2 (lane-padded)
                pl.BlockSpec((1, OUT_PAD), const),                           # b2 (lane-padded)
            ],
            out_specs=pl.BlockSpec((tile_b, OUT_PAD), lambda i: (i, 0)),
        ),
        compiler_params=pltpu.CompilerParams(
            dimension_semantics=("parallel",),   # v7x: batch tiles split across both TCs
        ),
    )(x, uriT, w1_stacked, b1, w2_pad, b2_pad)
    return out[:, :OUTPUT_SIZE]


# ------------------------------- plain-JAX reference -------------------------------
def reference_forward(x, urT, uiT, w1, b1, w2, b2):
    xh = x / jnp.sqrt(jnp.sum(x * x, axis=-1, keepdims=True) + EPS)
    pr, pi = xh @ urT, xh @ uiT
    probs = pr * pr + pi * pi
    h = jnp.maximum(probs @ w1 + b1, 0.0)
    y = jnp.exp(h @ w2 + b2)
    return y / jnp.sum(y[:, NR0:NR1], axis=1, keepdims=True)


# -------------------------------------- main --------------------------------------
if __name__ == "__main__":
    key = jax.random.PRNGKey(0)
    k_x, k_q, k_w1, k_b1, k_w2, k_b2 = jax.random.split(key, 6)

    # encoder(*input) output embedding (stand-in for the MPN encoder output)
    x = jax.random.normal(k_x, (BATCH, HIDDEN_SIZE), dtype=jnp.float32)

    # qnn weights: TorchLayer default init ~ U(0, 2*pi), shape (qnn_layer, num_qubits)
    qnn_w = np.asarray(
        jax.random.uniform(k_q, (QNN_LAYERS, NUM_QUBITS), minval=0.0, maxval=2.0 * math.pi)
    ).astype(np.float64)
    U = basic_entangler_unitary(qnn_w)                           # [H, H] complex
    urT = jnp.asarray(U.real.T, dtype=jnp.float32)
    uiT = jnp.asarray(U.imag.T, dtype=jnp.float32)
    uriT = jnp.concatenate([urT, uiT], axis=1)                   # [H, 2H] fused real|imag

    # FFN linear layers (deterministic synthetic init), stored as [in, out]
    w1 = jax.random.normal(k_w1, (HIDDEN_SIZE, FFN_HIDDEN), dtype=jnp.float32) * 0.2
    b1 = jax.random.normal(k_b1, (1, FFN_HIDDEN), dtype=jnp.float32) * 0.1
    w2 = jax.random.normal(k_w2, (FFN_HIDDEN, OUTPUT_SIZE), dtype=jnp.float32) * 0.2
    b2 = jax.random.normal(k_b2, (1, OUTPUT_SIZE), dtype=jnp.float32) * 0.1

    # one-time kernel-side parameter packing (pure setup, outside the hot path)
    w1_stacked = jnp.concatenate([w1, w1], axis=0)                                  # [2H, FFN]
    w2_pad = jnp.zeros((FFN_HIDDEN, OUT_PAD), jnp.float32).at[:, :OUTPUT_SIZE].set(w2)
    b2_pad = jnp.zeros((1, OUT_PAD), jnp.float32).at[:, :OUTPUT_SIZE].set(b2)

    out = molecule_model_forward(x, uriT, w1_stacked, b1, w2_pad, b2_pad)
    out = jax.block_until_ready(out)

    ref = reference_forward(x, urT, uiT, w1, b1, w2, b2)
    assert out.shape == (BATCH, OUTPUT_SIZE)
    assert bool(jnp.all(jnp.isfinite(out)))
    assert bool(jnp.allclose(out, ref, rtol=1e-2, atol=1e-2))
    # rows are normalized over norm_range == full (real) output
    assert bool(jnp.allclose(jnp.sum(out, axis=1), 1.0, atol=1e-2))

    print("KERNEL_OK")
</pallas_src>

<mosaic_0001>
module attributes {stable_mosaic.version = 11 : i64} {
  func.func @molecule_ffn_kernel(%arg0: i32, %arg1: memref<128x32xf32, #tpu.memory_space<vmem>>, %arg2: memref<32x64xf32, #tpu.memory_space<vmem>>, %arg3: memref<64x32xf32, #tpu.memory_space<vmem>>, %arg4: memref<1x32xf32, #tpu.memory_space<vmem>>, %arg5: memref<32x128xf32, #tpu.memory_space<vmem>>, %arg6: memref<1x128xf32, #tpu.memory_space<vmem>>, %arg7: memref<128x128xf32, #tpu.memory_space<vmem>>) attributes {dimension_semantics = [#tpu.dimension_semantics<parallel>], iteration_bounds = array<i64: 1>, scalar_prefetch = 0 : i64, scratch_operands = 0 : i64, tpu.core_type = #tpu.core_type<tc>, window_params = [{transform_indices = @transform_0, window_bounds = array<i64: 128, 32>}, {pipeline_mode = #tpu.pipeline_mode<synchronous>, transform_indices = @transform_1, window_bounds = array<i64: 32, 64>}, {pipeline_mode = #tpu.pipeline_mode<synchronous>, transform_indices = @transform_2, window_bounds = array<i64: 64, 32>}, {pipeline_mode = #tpu.pipeline_mode<synchronous>, transform_indices = @transform_3, window_bounds = array<i64: 1, 32>}, {pipeline_mode = #tpu.pipeline_mode<synchronous>, transform_indices = @transform_4, window_bounds = array<i64: 32, 128>}, {pipeline_mode = #tpu.pipeline_mode<synchronous>, transform_indices = @transform_5, window_bounds = array<i64: 1, 128>}, {transform_indices = @transform_6, window_bounds = array<i64: 128, 128>}]} {
    %c0 = arith.constant 0 : index
    %c0_0 = arith.constant 0 : index
    %0 = vector.load %arg1[%c0, %c0_0] : memref<128x32xf32, #tpu.memory_space<vmem>>, vector<128x32xf32>
    %1 = arith.mulf %0, %0 : vector<128x32xf32>
    %cst = arith.constant dense<0.000000e+00> : vector<128xf32>
    %2 = vector.multi_reduction <add>, %1, %cst [1] : vector<128x32xf32> to vector<128xf32>
    %3 = vector.shape_cast %2 : vector<128xf32> to vector<128x1xf32>
    %cst_1 = arith.constant 9.99999996E-13 : f32
    %4 = vector.broadcast %cst_1 : f32 to vector<128x1xf32>
    %5 = arith.addf %3, %4 : vector<128x1xf32>
    %6 = math.rsqrt %5 : vector<128x1xf32>
    %7 = vector.broadcast %6 : vector<128x1xf32> to vector<128x32xf32>
    %8 = arith.mulf %0, %7 : vector<128x32xf32>
    %c0_2 = arith.constant 0 : index
    %c0_3 = arith.constant 0 : index
    %9 = vector.load %arg2[%c0_2, %c0_3] : memref<32x64xf32, #tpu.memory_space<vmem>>, vector<32x64xf32>
    %cst_4 = arith.constant dense<0.000000e+00> : vector<128x64xf32>
    %10 = tpu.matmul %8, %9, %cst_4 {dimension_numbers = #tpu.dot_dimension_numbers<[1], [0], [0], [1], [0, 0, 1, 1], [], []>} : vector<128x32xf32>, vector<32x64xf32>, vector<128x64xf32> -> vector<128x64xf32>
    %11 = arith.mulf %10, %10 : vector<128x64xf32>
    %c0_5 = arith.constant 0 : index
    %c0_6 = arith.constant 0 : index
    %12 = vector.load %arg3[%c0_5, %c0_6] : memref<64x32xf32, #tpu.memory_space<vmem>>, vector<64x32xf32>
    %cst_7 = arith.constant dense<0.000000e+00> : vector<128x32xf32>
    %13 = tpu.matmul %11, %12, %cst_7 {dimension_numbers = #tpu.dot_dimension_numbers<[1], [0], [0], [1], [0, 0, 1, 1], [], []>} : vector<128x64xf32>, vector<64x32xf32>, vector<128x32xf32> -> vector<128x32xf32>
    %c0_8 = arith.constant 0 : index
    %c0_9 = arith.constant 0 : index
    %14 = vector.load %arg4[%c0_8, %c0_9] : memref<1x32xf32, #tpu.memory_space<vmem>>, vector<1x32xf32>
    %15 = vector.broadcast %14 : vector<1x32xf32> to vector<128x32xf32>
    %16 = arith.addf %13, %15 : vector<128x32xf32>
    %cst_10 = arith.constant 0.000000e+00 : f32
    %17 = vector.broadcast %cst_10 : f32 to vector<128x32xf32>
    %18 = arith.maximumf %16, %17 : vector<128x32xf32>
    %c0_11 = arith.constant 0 : index
    %c0_12 = arith.constant 0 : index
    %19 = vector.load %arg5[%c0_11, %c0_12] : memref<32x128xf32, #tpu.memory_space<vmem>>, vector<32x128xf32>
    %cst_13 = arith.constant dense<0.000000e+00> : vector<128x128xf32>
    %20 = tpu.matmul %18, %19, %cst_13 {dimension_numbers = #tpu.dot_dimension_numbers<[1], [0], [0], [1], [0, 0, 1, 1], [], []>} : vector<128x32xf32>, vector<32x128xf32>, vector<128x128xf32> -> vector<128x128xf32>
    %c0_14 = arith.constant 0 : index
    %c0_15 = arith.constant 0 : index
    %21 = vector.load %arg6[%c0_14, %c0_15] : memref<1x128xf32, #tpu.memory_space<vmem>>, vector<1x128xf32>
    %22 = vector.broadcast %21 : vector<1x128xf32> to vector<128x128xf32>
    %23 = arith.addf %20, %22 : vector<128x128xf32>
    %cst_16 = arith.constant dense<0xFF800000> : vector<128xf32>
    %24 = vector.multi_reduction <maximumf>, %23, %cst_16 [1] : vector<128x128xf32> to vector<128xf32>
    %25 = vector.shape_cast %24 : vector<128xf32> to vector<128x1xf32>
    %26 = vector.broadcast %25 : vector<128x1xf32> to vector<128x128xf32>
    %27 = arith.subf %23, %26 : vector<128x128xf32>
    %28 = math.exp %27 : vector<128x128xf32>
    %29 = tpu.iota {dimensions = array<i32: 1>} : vector<128x128xi32>
    %c0_i32 = arith.constant 0 : i32
    %30 = vector.broadcast %c0_i32 : i32 to vector<128x128xi32>
    %31 = arith.cmpi sge, %29, %30 : vector<128x128xi32>
    %c8_i32 = arith.constant 8 : i32
    %32 = vector.broadcast %c8_i32 : i32 to vector<128x128xi32>
    %33 = arith.cmpi slt, %29, %32 : vector<128x128xi32>
    %34 = arith.andi %31, %33 : vector<128x128xi1>
    %cst_17 = arith.constant 0.000000e+00 : f32
    %35 = vector.broadcast %cst_17 : f32 to vector<128x128xf32>
    %36 = arith.select %34, %28, %35 : vector<128x128xi1>, vector<128x128xf32>
    %cst_18 = arith.constant dense<0.000000e+00> : vector<128xf32>
    %37 = vector.multi_reduction <add>, %36, %cst_18 [1] : vector<128x128xf32> to vector<128xf32>
    %38 = vector.shape_cast %37 : vector<128xf32> to vector<128x1xf32>
    %39 = tpu.reciprocal %38 {approx = true} : vector<128x1xf32> -> vector<128x1xf32>
    %40 = vector.broadcast %39 : vector<128x1xf32> to vector<128x128xf32>
    %41 = arith.mulf %28, %40 : vector<128x128xf32>
    %c0_19 = arith.constant 0 : index
    %c0_20 = arith.constant 0 : index
    %42 = vector.load %arg7[%c0_19, %c0_20] : memref<128x128xf32, #tpu.memory_space<vmem>>, vector<128x128xf32>
    tpu.vector_store %arg7[%c0_19, %c0_20], %41 {strides = array<i32>} : memref<128x128xf32, #tpu.memory_space<vmem>>, vector<128x128xf32>,
    return
  }
  func.func @transform_0(%arg0: i32) -> (i32, i32) {
    %c0_i32 = arith.constant 0 : i32
    %c0_i32_0 = arith.constant 0 : i32
    return %arg0, %c0_i32 : i32, i32
  }
  func.func @transform_1(%arg0: i32) -> (i32, i32) {
    %c0_i32 = arith.constant 0 : i32
    %c0_i32_0 = arith.constant 0 : i32
    %c0_i32_1 = arith.constant 0 : i32
    return %c0_i32, %c0_i32_0 : i32, i32
  }
  func.func @transform_2(%arg0: i32) -> (i32, i32) {
    %c0_i32 = arith.constant 0 : i32
    %c0_i32_0 = arith.constant 0 : i32
    %c0_i32_1 = arith.constant 0 : i32
    return %c0_i32, %c0_i32_0 : i32, i32
  }
  func.func @transform_3(%arg0: i32) -> (i32, i32) {
    %c0_i32 = arith.constant 0 : i32
    %c0_i32_0 = arith.constant 0 : i32
    %c0_i32_1 = arith.constant 0 : i32
    return %c0_i32, %c0_i32_0 : i32, i32
  }
  func.func @transform_4(%arg0: i32) -> (i32, i32) {
    %c0_i32 = arith.constant 0 : i32
    %c0_i32_0 = arith.constant 0 : i32
    %c0_i32_1 = arith.constant 0 : i32
    return %c0_i32, %c0_i32_0 : i32, i32
  }
  func.func @transform_5(%arg0: i32) -> (i32, i32) {
    %c0_i32 = arith.constant 0 : i32
    %c0_i32_0 = arith.constant 0 : i32
    %c0_i32_1 = arith.constant 0 : i32
    return %c0_i32, %c0_i32_0 : i32, i32
  }
  func.func @transform_6(%arg0: i32) -> (i32, i32) {
    %c0_i32 = arith.constant 0 : i32
    %c0_i32_0 = arith.constant 0 : i32
    return %arg0, %c0_i32 : i32, i32
  }
}

</mosaic_0001>

<llo_original>
// kernel: tpu_custom_call.1
$region0: #{tpu_custom_call.1}
  #allocation0 [shape = 'u32[]', space=smem, size = 0x4, offset = 0x4, fixed_abs, tag = 'smem constant byte address 0x4 - core index']
  #allocation1 [shape = 'u32[144,128]{1,0:T(1,128)}', space=vmem, size = 0x12000, scoped, tag = 'internal scratch']
  %s0 = inlined_call_operand.vmem [shape: f32[128,32], index: 0, kind: input, shape index: {}]
  %s1 = inlined_call_operand.vmem [shape: f32[32,64], index: 1, kind: input, shape index: {}]
  %s2 = inlined_call_operand.vmem [shape: f32[64,32], index: 2, kind: input, shape index: {}]
  %s3 = inlined_call_operand.vmem [shape: f32[1,32], index: 3, kind: input, shape index: {}]
  %s4 = inlined_call_operand.vmem [shape: f32[32,128], index: 4, kind: input, shape index: {}]
  %s5 = inlined_call_operand.vmem [shape: f32[1,128], index: 5, kind: input, shape index: {}]
  %s6 = inlined_call_operand.hbm [shape: f32[128,128], index: 6, kind: output, shape index: {}]
  %s7 = sld [smem:[#allocation0]]
  $region34: #{tpu_custom_call.1} parent=0
    _
  %s9 = ssub.s32 1, %s7
  %s10 = scalar_select 0, %s9, %s7
  $region1: #{tpu_custom_call.1} parent=0
    #allocation2 [shape = 'u8[65536]{0}', space=vmem, size = 0x10000, scoped, tag = 'output window, operand 0, single buffered']
    #allocation3 [shape = 's32[1]{0}', space=sflag, size = 0x4, scoped, tag = 'scoped memory for tpu_custom_call.1']
    %11 = vsyncpa [#allocation3], 0
    // Predicated region
    $region2: #{tpu_custom_call.1} parent=1 // pred_check
      _
    $region3: #{tpu_custom_call.1} parent=1 // pred_check_branch
      %13 = sbr.rel (0) target = $region5
    $region4: #{tpu_custom_call.1} parent=1 // pred_region
      _
    $region5: #{tpu_custom_call.1} parent=1 // pred_fallthru
      _
    // Predicated region
    $region6: #{tpu_custom_call.1} parent=1 // pred_check
      _
    $region7: #{tpu_custom_call.1} parent=1 // pred_check_branch
      %15 = sbr.rel (0) target = $region9
    $region8: #{tpu_custom_call.1} parent=1 // pred_region
      _
    $region9: #{tpu_custom_call.1} parent=1 // pred_fallthru
      _
    // Predicated region
    $region10: #{tpu_custom_call.1} parent=1 // pred_check
      _
    $region11: #{tpu_custom_call.1} parent=1 // pred_check_branch
      %17 = sbr.rel (0) target = $region13
    $region12: #{tpu_custom_call.1} parent=1 // pred_region
      _
    $region13: #{tpu_custom_call.1} parent=1 // pred_fallthru
      _
    // Predicated region
    $region14: #{tpu_custom_call.1} parent=1 // pred_check
      _
    $region15: #{tpu_custom_call.1} parent=1 // pred_check_branch
      %19 = sbr.rel (0) target = $region17
    $region16: #{tpu_custom_call.1} parent=1 // pred_region
      _
    $region17: #{tpu_custom_call.1} parent=1 // pred_fallthru
      _
    // Predicated region
    $region18: #{tpu_custom_call.1} parent=1 // pred_check
      _
    $region19: #{tpu_custom_call.1} parent=1 // pred_check_branch
      %21 = sbr.rel (0) target = $region21
    $region20: #{tpu_custom_call.1} parent=1 // pred_region
      _
    $region21: #{tpu_custom_call.1} parent=1 // pred_fallthru
      _
    // Predicated region
    $region22: #{tpu_custom_call.1} parent=1 // pred_check
      _
    $region23: #{tpu_custom_call.1} parent=1 // pred_check_branch
      %23 = sbr.rel (0) target = $region25
    $region24: #{tpu_custom_call.1} parent=1 // pred_region
      _
    $region25: #{tpu_custom_call.1} parent=1 // pred_fallthru
      _
    %v24 = vld [vmem:[%s0] sm:$0xff]
    %v25 = vld [vmem:[%s0 + $0x8] sm:$0xff]
    %v26 = vld [vmem:[%s0 + $0x10] sm:$0xff]
    %v27 = vld [vmem:[%s0 + $0x18] sm:$0xff]
    %v28 = vld [vmem:[%s0 + $0x20] sm:$0xff]
    %v29 = vld [vmem:[%s0 + $0x28] sm:$0xff]
    %v30 = vld [vmem:[%s0 + $0x30] sm:$0xff]
    %v31 = vld [vmem:[%s0 + $0x38] sm:$0xff]
    %v32 = vld [vmem:[%s0 + $0x40] sm:$0xff]
    %v33 = vld [vmem:[%s0 + $0x48] sm:$0xff]
    %v34 = vld [vmem:[%s0 + $0x50] sm:$0xff]
    %v35 = vld [vmem:[%s0 + $0x58] sm:$0xff]
    %v36 = vld [vmem:[%s0 + $0x60] sm:$0xff]
    %v37 = vld [vmem:[%s0 + $0x68] sm:$0xff]
    %v38 = vld [vmem:[%s0 + $0x70] sm:$0xff]
    %v39 = vld [vmem:[%s0 + $0x78] sm:$0xff]
    %v40 = vmul.f32 %v24, %v24
    %v41 = vmul.f32 %v25, %v25
    %v42 = vmul.f32 %v26, %v26
    %v43 = vmul.f32 %v27, %v27
    %v44 = vmul.f32 %v28, %v28
    %v45 = vmul.f32 %v29, %v29
    %v46 = vmul.f32 %v30, %v30
    %v47 = vmul.f32 %v31, %v31
    %v48 = vmul.f32 %v32, %v32
    %v49 = vmul.f32 %v33, %v33
    %v50 = vmul.f32 %v34, %v34
    %v51 = vmul.f32 %v35, %v35
    %v52 = vmul.f32 %v36, %v36
    %v53 = vmul.f32 %v37, %v37
    %v54 = vmul.f32 %v38, %v38
    %v55 = vmul.f32 %v39, %v39
    %vm56 = vcmask 261120
    %v57 = vsel %vm56, %v40, 0.0
    %58 = vadd.xlane.f32.xlu0 %v57
    %v59 = vpop.xlane.xlu0 %58
    %v60 = vsel %vm56, %v41, 0.0
    %61 = vadd.xlane.f32.xlu0 %v60
    %v62 = vpop.xlane.xlu0 %61
    %v63 = vsel %vm56, %v42, 0.0
    %64 = vadd.xlane.f32.xlu0 %v63
    %v65 = vpop.xlane.xlu0 %64
    %v66 = vsel %vm56, %v43, 0.0
    %67 = vadd.xlane.f32.xlu0 %v66
    %v68 = vpop.xlane.xlu0 %67
    %v69 = vsel %vm56, %v44, 0.0
    %70 = vadd.xlane.f32.xlu0 %v69
    %v71 = vpop.xlane.xlu0 %70
    %v72 = vsel %vm56, %v45, 0.0
    %73 = vadd.xlane.f32.xlu0 %v72
    %v74 = vpop.xlane.xlu0 %73
    %v75 = vsel %vm56, %v46, 0.0
    %76 = vadd.xlane.f32.xlu0 %v75
    %v77 = vpop.xlane.xlu0 %76
    %v78 = vsel %vm56, %v47, 0.0
    %79 = vadd.xlane.f32.xlu0 %v78
    %v80 = vpop.xlane.xlu0 %79
    %v81 = vsel %vm56, %v48, 0.0
    %82 = vadd.xlane.f32.xlu0 %v81
    %v83 = vpop.xlane.xlu0 %82
    %v84 = vsel %vm56, %v49, 0.0
    %85 = vadd.xlane.f32.xlu0 %v84
    %v86 = vpop.xlane.xlu0 %85
    %v87 = vsel %vm56, %v50, 0.0
    %88 = vadd.xlane.f32.xlu0 %v87
    %v89 = vpop.xlane.xlu0 %88
    %v90 = vsel %vm56, %v51, 0.0
    %91 = vadd.xlane.f32.xlu0 %v90
    %v92 = vpop.xlane.xlu0 %91
    %v93 = vsel %vm56, %v52, 0.0
    %94 = vadd.xlane.f32.xlu0 %v93
    %v95 = vpop.xlane.xlu0 %94
    %v96 = vsel %vm56, %v53, 0.0
    %97 = vadd.xlane.f32.xlu0 %v96
    %v98 = vpop.xlane.xlu0 %97
    %v99 = vsel %vm56, %v54, 0.0
    %100 = vadd.xlane.f32.xlu0 %v99
    %v101 = vpop.xlane.xlu0 %100
    %v102 = vsel %vm56, %v55, 0.0
    %103 = vadd.xlane.f32.xlu0 %v102
    %v104 = vpop.xlane.xlu0 %103
    %v105 = vadd.f32 %v59, 1e-12
    %v106 = vadd.f32 %v62, 1e-12
    %v107 = vadd.f32 %v65, 1e-12
    %v108 = vadd.f32 %v68, 1e-12
    %v109 = vadd.f32 %v71, 1e-12
    %v110 = vadd.f32 %v74, 1e-12
    %v111 = vadd.f32 %v77, 1e-12
    %v112 = vadd.f32 %v80, 1e-12
    %v113 = vadd.f32 %v83, 1e-12
    %v114 = vadd.f32 %v86, 1e-12
    %v115 = vadd.f32 %v89, 1e-12
    %v116 = vadd.f32 %v92, 1e-12
    %v117 = vadd.f32 %v95, 1e-12
    %v118 = vadd.f32 %v98, 1e-12
    %v119 = vadd.f32 %v101, 1e-12
    %v120 = vadd.f32 %v104, 1e-12
    %v121 = vrsqrt.pop %v105
    %v122 = vrsqrt.pop %v106
    %v123 = vrsqrt.pop %v107
    %v124 = vrsqrt.pop %v108
    %v125 = vrsqrt.pop %v109
    %v126 = vrsqrt.pop %v110
    %v127 = vrsqrt.pop %v111
    %v128 = vrsqrt.pop %v112
    %v129 = vrsqrt.pop %v113
    %v130 = vrsqrt.pop %v114
    %v131 = vrsqrt.pop %v115
    %v132 = vrsqrt.pop %v116
    %v133 = vrsqrt.pop %v117
    %v134 = vrsqrt.pop %v118
    %v135 = vrsqrt.pop %v119
    %v136 = vrsqrt.pop %v120
    %v137 = vmul.f32 %v24, %v121
    %v138 = vmul.f32 %v25, %v122
    %v139 = vmul.f32 %v26, %v123
    %v140 = vmul.f32 %v27, %v124
    %v141 = vmul.f32 %v28, %v125
    %v142 = vmul.f32 %v29, %v126
    %v143 = vmul.f32 %v30, %v127
    %v144 = vmul.f32 %v31, %v128
    %v145 = vmul.f32 %v32, %v129
    %v146 = vmul.f32 %v33, %v130
    %v147 = vmul.f32 %v34, %v131
    %v148 = vmul.f32 %v35, %v132
    %v149 = vmul.f32 %v36, %v133
    %v150 = vmul.f32 %v37, %v134
    %v151 = vmul.f32 %v38, %v135
    %v152 = vmul.f32 %v39, %v136
    %v153 = vld [vmem:[%s1] sm:$0xff]
    %v154 = vld [vmem:[%s1 + $0x8] sm:$0xff]
    %v155 = vld [vmem:[%s1 + $0x10] sm:$0xff]
    %v156 = vld [vmem:[%s1 + $0x18] sm:$0xff]
    %v158 = vsel %vm56, %v137, 0
    %v161 = vsel %vm56, %v138, 0
    %v164 = vsel %vm56, %v139, 0
    %v167 = vsel %vm56, %v140, 0
    %v170 = vsel %vm56, %v141, 0
    %v173 = vsel %vm56, %v142, 0
    %v176 = vsel %vm56, %v143, 0
    %v179 = vsel %vm56, %v144, 0
    %v182 = vsel %vm56, %v145, 0
    %v185 = vsel %vm56, %v146, 0
    %v188 = vsel %vm56, %v147, 0
    %v191 = vsel %vm56, %v148, 0
    %v194 = vsel %vm56, %v149, 0
    %v197 = vsel %vm56, %v150, 0
    %v200 = vsel %vm56, %v151, 0
    %v203 = vsel %vm56, %v152, 0
    %205 = vmatprep.subr.mxu0 0.0
    %206 = vmatpush1.msra.mxu0 0.0
    %207 = vmatprep.subr.mxu0 0.0
    %208 = vmatpush1.msra.mxu0 0.0
    %209 = vmatprep.subr.mxu0 0.0
    %210 = vmatpush1.msra.mxu0 0.0
    %211 = vmatprep.subr.mxu0 0.0
    %212 = vmatpush1.msra.mxu0 0.0
    %213 = vmatprep.subr.mxu0 0.0
    %214 = vmatpush1.msra.mxu0 0.0
    %215 = vmatprep.subr.mxu0 0.0
    %216 = vmatpush1.msra.mxu0 0.0
    %217 = vmatprep.subr.mxu0 0.0
    %218 = vmatpush1.msra.mxu0 0.0
    %219 = vmatprep.subr.mxu0 0.0
    %220 = vmatpush1.msra.mxu0 0.0
    %221 = vmatprep.subr.mxu0 0.0
    %222 = vmatpush1.msra.mxu0 0.0
    %223 = vmatprep.subr.mxu0 0.0
    %224 = vmatpush1.msra.mxu0 0.0
    %225 = vmatprep.subr.mxu0 0.0
    %226 = vmatpush1.msra.mxu0 0.0
    %227 = vmatprep.subr.mxu0 0.0
    %228 = vmatpush1.msra.mxu0 0.0
    %229 = vmatprep.subr.mxu0 0.0
    %230 = vmatpush1.msra.mxu0 %v156
    %231 = vmatprep.subr.mxu0 0.0
    %232 = vmatpush1.msra.mxu0 %v155
    %233 = vmatprep.subr.mxu0 0.0
    %234 = vmatpush1.msra.mxu0 %v154
    %235 = vmatprep.subr.mxu0 0.0
    %236 = vmatpush1.msra.mxu0 %v153
    %237 = vmatprep.subr.mxu0 0.0
    %238 = vmatpush2.msra.mxu0 0.0
    %239 = vmatprep.subr.mxu0 0.0
    %240 = vmatpush2.msra.mxu0 0.0
    %241 = vmatprep.subr.mxu0 0.0
    %242 = vmatpush2.msra.mxu0 0.0
    %243 = vmatprep.subr.mxu0 0.0
    %244 = vmatpush2.msra.mxu0 0.0
    %245 = vmatprep.subr.mxu0 0.0
    %246 = vmatpush2.msra.mxu0 0.0
    %247 = vmatprep.subr.mxu0 0.0
    %248 = vmatpush2.msra.mxu0 0.0
    %249 = vmatprep.subr.mxu0 0.0
    %250 = vmatpush2.msra.mxu0 0.0
    %251 = vmatprep.subr.mxu0 0.0
    %252 = vmatpush2.msra.mxu0 0.0
    %253 = vmatprep.subr.mxu0 0.0
    %254 = vmatpush2.msra.mxu0 0.0
    %255 = vmatprep.subr.mxu0 0.0
    %256 = vmatpush2.msra.mxu0 0.0
    %257 = vmatprep.subr.mxu0 0.0
    %258 = vmatpush2.msra.mxu0 0.0
    %259 = vmatprep.subr.mxu0 0.0
    %260 = vmatpush2.msra.mxu0 0.0
    %261 = vmatprep.subr.mxu0 0.0
    %262 = vmatpush2.msra.mxu0 0.0
    %263 = vmatprep.subr.mxu0 0.0
    %264 = vmatpush2.msra.mxu0 0.0
    %265 = vmatprep.subr.mxu0 0.0
    %266 = vmatpush2.msra.mxu0 0.0
    %267 = vmatprep.subr.mxu0 0.0
    %268 = vmatpush2.msra.mxu0 0.0
    %269 = vmatprep.mubr.f32.mxu0 0.0
    %270 = vmatmul.mubr.f32.gmra.mxu0 %v158
    %v271 = vpop.f32.mrf.mxu0
    %v272 = vadd.f32 0.0, %v271
    %v273 = vpop.f32.mrf.mxu0
    %274 = vmatprep.mubr.f32.mxu0 0.0
    %275 = vmatmul.mubr.f32.gmra.mxu0 %v161
    %v276 = vpop.f32.mrf.mxu0
    %v277 = vadd.f32 0.0, %v276
    %v278 = vpop.f32.mrf.mxu0
    %279 = vmatprep.mubr.f32.mxu0 0.0
    %280 = vmatmul.mubr.f32.gmra.mxu0 %v164
    %v281 = vpop.f32.mrf.mxu0
    %v282 = vadd.f32 0.0, %v281
    %v283 = vpop.f32.mrf.mxu0
    %284 = vmatprep.mubr.f32.mxu0 0.0
    %285 = vmatmul.mubr.f32.gmra.mxu0 %v167
    %v286 = vpop.f32.mrf.mxu0
    %v287 = vadd.f32 0.0, %v286
    %v288 = vpop.f32.mrf.mxu0
    %289 = vmatprep.mubr.f32.mxu0 0.0
    %290 = vmatmul.mubr.f32.gmra.mxu0 %v170
    %v291 = vpop.f32.mrf.mxu0
    %v292 = vadd.f32 0.0, %v291
    %v293 = vpop.f32.mrf.mxu0
    %294 = vmatprep.mubr.f32.mxu0 0.0
    %295 = vmatmul.mubr.f32.gmra.mxu0 %v173
    %v296 = vpop.f32.mrf.mxu0
    %v297 = vadd.f32 0.0, %v296
    %v298 = vpop.f32.mrf.mxu0
    %299 = vmatprep.mubr.f32.mxu0 0.0
    %300 = vmatmul.mubr.f32.gmra.mxu0 %v176
    %v301 = vpop.f32.mrf.mxu0
    %v302 = vadd.f32 0.0, %v301
    %v303 = vpop.f32.mrf.mxu0
    %304 = vmatprep.mubr.f32.mxu0 0.0
    %305 = vmatmul.mubr.f32.gmra.mxu0 %v179
    %v306 = vpop.f32.mrf.mxu0
    %v307 = vadd.f32 0.0, %v306
    %v308 = vpop.f32.mrf.mxu0
    %309 = vmatprep.mubr.f32.mxu0 0.0
    %310 = vmatmul.mubr.f32.gmra.mxu0 %v182
    %v311 = vpop.f32.mrf.mxu0
    %v312 = vadd.f32 0.0, %v311
    %v313 = vpop.f32.mrf.mxu0
    %314 = vmatprep.mubr.f32.mxu0 0.0
    %315 = vmatmul.mubr.f32.gmra.mxu0 %v185
    %v316 = vpop.f32.mrf.mxu0
    %v317 = vadd.f32 0.0, %v316
    %v318 = vpop.f32.mrf.mxu0
    %319 = vmatprep.mubr.f32.mxu0 0.0
    %320 = vmatmul.mubr.f32.gmra.mxu0 %v188
    %v321 = vpop.f32.mrf.mxu0
    %v322 = vadd.f32 0.0, %v321
    %v323 = vpop.f32.mrf.mxu0
    %324 = vmatprep.mubr.f32.mxu0 0.0
    %325 = vmatmul.mubr.f32.gmra.mxu0 %v191
    %v326 = vpop.f32.mrf.mxu0
    %v327 = vadd.f32 0.0, %v326
    %v328 = vpop.f32.mrf.mxu0
    %329 = vmatprep.mubr.f32.mxu0 0.0
    %330 = vmatmul.mubr.f32.gmra.mxu0 %v194
    %v331 = vpop.f32.mrf.mxu0
    %v332 = vadd.f32 0.0, %v331
    %v333 = vpop.f32.mrf.mxu0
    %334 = vmatprep.mubr.f32.mxu0 0.0
    %335 = vmatmul.mubr.f32.gmra.mxu0 %v197
    %v336 = vpop.f32.mrf.mxu0
    %v337 = vadd.f32 0.0, %v336
    %v338 = vpop.f32.mrf.mxu0
    %339 = vmatprep.mubr.f32.mxu0 0.0
    %340 = vmatmul.mubr.f32.gmra.mxu0 %v200
    %v341 = vpop.f32.mrf.mxu0
    %v342 = vadd.f32 0.0, %v341
    %v343 = vpop.f32.mrf.mxu0
    %344 = vmatprep.mubr.f32.mxu0 0.0
    %345 = vmatmul.mubr.f32.gmra.mxu0 %v203
    %v346 = vpop.f32.mrf.mxu0
    %v347 = vadd.f32 0.0, %v346
    %v348 = vpop.f32.mrf.mxu0
    %349 = vdwg.mxu0
    %v350 = vmul.f32 %v272, %v272
    %v351 = vmul.f32 %v277, %v277
    %v352 = vmul.f32 %v282, %v282
    %v353 = vmul.f32 %v287, %v287
    %v354 = vmul.f32 %v292, %v292
    %v355 = vmul.f32 %v297, %v297
    %v356 = vmul.f32 %v302, %v302
    %v357 = vmul.f32 %v307, %v307
    %v358 = vmul.f32 %v312, %v312
    %v359 = vmul.f32 %v317, %v317
    %v360 = vmul.f32 %v322, %v322
    %v361 = vmul.f32 %v327, %v327
    %v362 = vmul.f32 %v332, %v332
    %v363 = vmul.f32 %v337, %v337
    %v364 = vmul.f32 %v342, %v342
    %v365 = vmul.f32 %v347, %v347
    %v366 = vld [vmem:[%s2] sm:$0xff]
    %v367 = vld [vmem:[%s2 + $0x8] sm:$0xff]
    %v368 = vld [vmem:[%s2 + $0x10] sm:$0xff]
    %v369 = vld [vmem:[%s2 + $0x18] sm:$0xff]
    %v370 = vld [vmem:[%s2 + $0x20] sm:$0xff]
    %v371 = vld [vmem:[%s2 + $0x28] sm:$0xff]
    %v372 = vld [vmem:[%s2 + $0x30] sm:$0xff]
    %v373 = vld [vmem:[%s2 + $0x38] sm:$0xff]
    %v374 = vld [vmem:[%s3] sm:$0x1]
    %v376 = vlaneseq
    %v377 = vshrl.u32 %v376, 7
    %v378 = vsub.s32 0, %v377
    %v379 = vrot.slane %v374, %v378
    %vm381 = vcmask 523264
    %v383 = vsel %vm381, %v350, 0
    %v386 = vsel %vm381, %v351, 0
    %v389 = vsel %vm381, %v352, 0
    %v392 = vsel %vm381, %v353, 0
    %v395 = vsel %vm381, %v354, 0
    %v398 = vsel %vm381, %v355, 0
    %v401 = vsel %vm381, %v356, 0
    %v404 = vsel %vm381, %v357, 0
    %v407 = vsel %vm381, %v358, 0
    %v410 = vsel %vm381, %v359, 0
    %v413 = vsel %vm381, %v360, 0
    %v416 = vsel %vm381, %v361, 0
    %v419 = vsel %vm381, %v362, 0
    %v422 = vsel %vm381, %v363, 0
    %v425 = vsel %vm381, %v364, 0
    %v428 = vsel %vm381, %v365, 0
    %430 = vmatprep.subr.mxu0 0.0
    %431 = vmatpush1.msra.mxu0 0.0
    %432 = vmatprep.subr.mxu0 0.0
    %433 = vmatpush1.msra.mxu0 0.0
    %434 = vmatprep.subr.mxu0 0.0
    %435 = vmatpush1.msra.mxu0 0.0
    %436 = vmatprep.subr.mxu0 0.0
    %437 = vmatpush1.msra.mxu0 0.0
    %438 = vmatprep.subr.mxu0 0.0
    %439 = vmatpush1.msra.mxu0 0.0
    %440 = vmatprep.subr.mxu0 0.0
    %441 = vmatpush1.msra.mxu0 0.0
    %442 = vmatprep.subr.mxu0 0.0
    %443 = vmatpush1.msra.mxu0 0.0
    %444 = vmatprep.subr.mxu0 0.0
    %445 = vmatpush1.msra.mxu0 0.0
    %446 = vmatprep.subr.mxu0 0.0
    %447 = vmatpush1.msra.mxu0 %v373
    %448 = vmatprep.subr.mxu0 0.0
    %449 = vmatpush1.msra.mxu0 %v372
    %450 = vmatprep.subr.mxu0 0.0
    %451 = vmatpush1.msra.mxu0 %v371
    %452 = vmatprep.subr.mxu0 0.0
    %453 = vmatpush1.msra.mxu0 %v370
    %454 = vmatprep.subr.mxu0 0.0
    %455 = vmatpush1.msra.mxu0 %v369
    %456 = vmatprep.subr.mxu0 0.0
    %457 = vmatpush1.msra.mxu0 %v368
    %458 = vmatprep.subr.mxu0 0.0
    %459 = vmatpush1.msra.mxu0 %v367
    %460 = vmatprep.subr.mxu0 0.0
    %461 = vmatpush1.msra.mxu0 %v366
    %462 = vmatprep.subr.mxu0 0.0
    %463 = vmatpush2.msra.mxu0 0.0
    %464 = vmatprep.subr.mxu0 0.0
    %465 = vmatpush2.msra.mxu0 0.0
    %466 = vmatprep.subr.mxu0 0.0
    %467 = vmatpush2.msra.mxu0 0.0
    %468 = vmatprep.subr.mxu0 0.0
    %469 = vmatpush2.msra.mxu0 0.0
    %470 = vmatprep.subr.mxu0 0.0
    %471 = vmatpush2.msra.mxu0 0.0
    %472 = vmatprep.subr.mxu0 0.0
    %473 = vmatpush2.msra.mxu0 0.0
    %474 = vmatprep.subr.mxu0 0.0
    %475 = vmatpush2.msra.mxu0 0.0
    %476 = vmatprep.subr.mxu0 0.0
    %477 = vmatpush2.msra.mxu0 0.0
    %478 = vmatprep.subr.mxu0 0.0
    %479 = vmatpush2.msra.mxu0 0.0
    %480 = vmatprep.subr.mxu0 0.0
    %481 = vmatpush2.msra.mxu0 0.0
    %482 = vmatprep.subr.mxu0 0.0
    %483 = vmatpush2.msra.mxu0 0.0
    %484 = vmatprep.subr.mxu0 0.0
    %485 = vmatpush2.msra.mxu0 0.0
    %486 = vmatprep.subr.mxu0 0.0
    %487 = vmatpush2.msra.mxu0 0.0
    %488 = vmatprep.subr.mxu0 0.0
    %489 = vmatpush2.msra.mxu0 0.0
    %490 = vmatprep.subr.mxu0 0.0
    %491 = vmatpush2.msra.mxu0 0.0
    %492 = vmatprep.subr.mxu0 0.0
    %493 = vmatpush2.msra.mxu0 0.0
    %494 = vmatprep.mubr.f32.mxu0 0.0
    %495 = vmatmul.mubr.f32.gmra.mxu0 %v383
    %v496 = vpop.f32.mrf.mxu0
    %v497 = vadd.f32 %v379, %v496
    %v498 = vpop.f32.mrf.mxu0
    %499 = vmatprep.mubr.f32.mxu0 0.0
    %500 = vmatmul.mubr.f32.gmra.mxu0 %v386
    %v501 = vpop.f32.mrf.mxu0
    %v502 = vadd.f32 %v379, %v501
    %v503 = vpop.f32.mrf.mxu0
    %504 = vmatprep.mubr.f32.mxu0 0.0
    %505 = vmatmul.mubr.f32.gmra.mxu0 %v389
    %v506 = vpop.f32.mrf.mxu0
    %v507 = vadd.f32 %v379, %v506
    %v508 = vpop.f32.mrf.mxu0
    %509 = vmatprep.mubr.f32.mxu0 0.0
    %510 = vmatmul.mubr.f32.gmra.mxu0 %v392
    %v511 = vpop.f32.mrf.mxu0
    %v512 = vadd.f32 %v379, %v511
    %v513 = vpop.f32.mrf.mxu0
    %514 = vmatprep.mubr.f32.mxu0 0.0
    %515 = vmatmul.mubr.f32.gmra.mxu0 %v395
    %v516 = vpop.f32.mrf.mxu0
    %v517 = vadd.f32 %v379, %v516
    %v518 = vpop.f32.mrf.mxu0
    %519 = vmatprep.mubr.f32.mxu0 0.0
    %520 = vmatmul.mubr.f32.gmra.mxu0 %v398
    %v521 = vpop.f32.mrf.mxu0
    %v522 = vadd.f32 %v379, %v521
    %v523 = vpop.f32.mrf.mxu0
    %524 = vmatprep.mubr.f32.mxu0 0.0
    %525 = vmatmul.mubr.f32.gmra.mxu0 %v401
    %v526 = vpop.f32.mrf.mxu0
    %v527 = vadd.f32 %v379, %v526
    %v528 = vpop.f32.mrf.mxu0
    %529 = vmatprep.mubr.f32.mxu0 0.0
    %530 = vmatmul.mubr.f32.gmra.mxu0 %v404
    %v531 = vpop.f32.mrf.mxu0
    %v532 = vadd.f32 %v379, %v531
    %v533 = vpop.f32.mrf.mxu0
    %534 = vmatprep.mubr.f32.mxu0 0.0
    %535 = vmatmul.mubr.f32.gmra.mxu0 %v407
    %v536 = vpop.f32.mrf.mxu0
    %v537 = vadd.f32 %v379, %v536
    %v538 = vpop.f32.mrf.mxu0
    %539 = vmatprep.mubr.f32.mxu0 0.0
    %540 = vmatmul.mubr.f32.gmra.mxu0 %v410
    %v541 = vpop.f32.mrf.mxu0
    %v542 = vadd.f32 %v379, %v541
    %v543 = vpop.f32.mrf.mxu0
    %544 = vmatprep.mubr.f32.mxu0 0.0
    %545 = vmatmul.mubr.f32.gmra.mxu0 %v413
    %v546 = vpop.f32.mrf.mxu0
    %v547 = vadd.f32 %v379, %v546
    %v548 = vpop.f32.mrf.mxu0
    %549 = vmatprep.mubr.f32.mxu0 0.0
    %550 = vmatmul.mubr.f32.gmra.mxu0 %v416
    %v551 = vpop.f32.mrf.mxu0
    %v552 = vadd.f32 %v379, %v551
    %v553 = vpop.f32.mrf.mxu0
    %554 = vmatprep.mubr.f32.mxu0 0.0
    %555 = vmatmul.mubr.f32.gmra.mxu0 %v419
    %v556 = vpop.f32.mrf.mxu0
    %v557 = vadd.f32 %v379, %v556
    %v558 = vpop.f32.mrf.mxu0
    %559 = vmatprep.mubr.f32.mxu0 0.0
    %560 = vmatmul.mubr.f32.gmra.mxu0 %v422
    %v561 = vpop.f32.mrf.mxu0
    %v562 = vadd.f32 %v379, %v561
    %v563 = vpop.f32.mrf.mxu0
    %564 = vmatprep.mubr.f32.mxu0 0.0
    %565 = vmatmul.mubr.f32.gmra.mxu0 %v425
    %v566 = vpop.f32.mrf.mxu0
    %v567 = vadd.f32 %v379, %v566
    %v568 = vpop.f32.mrf.mxu0
    %569 = vmatprep.mubr.f32.mxu0 0.0
    %570 = vmatmul.mubr.f32.gmra.mxu0 %v428
    %v571 = vpop.f32.mrf.mxu0
    %v572 = vadd.f32 %v379, %v571
    %v573 = vpop.f32.mrf.mxu0
    %574 = vdwg.mxu0
    %v575 = vmax.f32 %v497, 0.0
    %v576 = vmax.f32 %v502, 0.0
    %v577 = vmax.f32 %v507, 0.0
    %v578 = vmax.f32 %v512, 0.0
    %v579 = vmax.f32 %v517, 0.0
    %v580 = vmax.f32 %v522, 0.0
    %v581 = vmax.f32 %v527, 0.0
    %v582 = vmax.f32 %v532, 0.0
    %v583 = vmax.f32 %v537, 0.0
    %v584 = vmax.f32 %v542, 0.0
    %v585 = vmax.f32 %v547, 0.0
    %v586 = vmax.f32 %v552, 0.0
    %v587 = vmax.f32 %v557, 0.0
    %v588 = vmax.f32 %v562, 0.0
    %v589 = vmax.f32 %v567, 0.0
    %v590 = vmax.f32 %v572, 0.0
    %v591 = vld [vmem:[%s4] sm:$0xff]
    %v592 = vld [vmem:[%s4 + $0x8] sm:$0xff]
    %v593 = vld [vmem:[%s4 + $0x10] sm:$0xff]
    %v594 = vld [vmem:[%s4 + $0x18] sm:$0xff]
    %v595 = vld [vmem:[%s5] sm:$0x1]
    %v597 = vlaneseq
    %v598 = vshrl.u32 %v597, 7
    %v599 = vsub.s32 0, %v598
    %v600 = vrot.slane %v595, %v599
    %v603 = vsel %vm56, %v575, 0
    %v606 = vsel %vm56, %v576, 0
    %v609 = vsel %vm56, %v577, 0
    %v612 = vsel %vm56, %v578, 0
    %v615 = vsel %vm56, %v579, 0
    %v618 = vsel %vm56, %v580, 0
    %v621 = vsel %vm56, %v581, 0
    %v624 = vsel %vm56, %v582, 0
    %v627 = vsel %vm56, %v583, 0
    %v630 = vsel %vm56, %v584, 0
    %v633 = vsel %vm56, %v585, 0
    %v636 = vsel %vm56, %v586, 0
    %v639 = vsel %vm56, %v587, 0
    %v642 = vsel %vm56, %v588, 0
    %v645 = vsel %vm56, %v589, 0
    %v648 = vsel %vm56, %v590, 0
    %650 = vmatprep.subr.mxu0 0.0
    %651 = vmatpush1.msra.mxu0 0.0
    %652 = vmatprep.subr.mxu0 0.0
    %653 = vmatpush1.msra.mxu0 0.0
    %654 = vmatprep.subr.mxu0 0.0
    %655 = vmatpush1.msra.mxu0 0.0
    %656 = vmatprep.subr.mxu0 0.0
    %657 = vmatpush1.msra.mxu0 0.0
    %658 = vmatprep.subr.mxu0 0.0
    %659 = vmatpush1.msra.mxu0 0.0
    %660 = vmatprep.subr.mxu0 0.0
    %661 = vmatpush1.msra.mxu0 0.0
    %662 = vmatprep.subr.mxu0 0.0
    %663 = vmatpush1.msra.mxu0 0.0
    %664 = vmatprep.subr.mxu0 0.0
    %665 = vmatpush1.msra.mxu0 0.0
    %666 = vmatprep.subr.mxu0 0.0
    %667 = vmatpush1.msra.mxu0 0.0
    %668 = vmatprep.subr.mxu0 0.0
    %669 = vmatpush1.msra.mxu0 0.0
    %670 = vmatprep.subr.mxu0 0.0
    %671 = vmatpush1.msra.mxu0 0.0
    %672 = vmatprep.subr.mxu0 0.0
    %673 = vmatpush1.msra.mxu0 0.0
    %674 = vmatprep.subr.mxu0 0.0
    %675 = vmatpush1.msra.mxu0 %v594
    %676 = vmatprep.subr.mxu0 0.0
    %677 = vmatpush1.msra.mxu0 %v593
    %678 = vmatprep.subr.mxu0 0.0
    %679 = vmatpush1.msra.mxu0 %v592
    %680 = vmatprep.subr.mxu0 0.0
    %681 = vmatpush1.msra.mxu0 %v591
    %682 = vmatprep.subr.mxu0 0.0
    %683 = vmatpush2.msra.mxu0 0.0
    %684 = vmatprep.subr.mxu0 0.0
    %685 = vmatpush2.msra.mxu0 0.0
    %686 = vmatprep.subr.mxu0 0.0
    %687 = vmatpush2.msra.mxu0 0.0
    %688 = vmatprep.subr.mxu0 0.0
    %689 = vmatpush2.msra.mxu0 0.0
    %690 = vmatprep.subr.mxu0 0.0
    %691 = vmatpush2.msra.mxu0 0.0
    %692 = vmatprep.subr.mxu0 0.0
    %693 = vmatpush2.msra.mxu0 0.0
    %694 = vmatprep.subr.mxu0 0.0
    %695 = vmatpush2.msra.mxu0 0.0
    %696 = vmatprep.subr.mxu0 0.0
    %697 = vmatpush2.msra.mxu0 0.0
    %698 = vmatprep.subr.mxu0 0.0
    %699 = vmatpush2.msra.mxu0 0.0
    %700 = vmatprep.subr.mxu0 0.0
    %701 = vmatpush2.msra.mxu0 0.0
    %702 = vmatprep.subr.mxu0 0.0
    %703 = vmatpush2.msra.mxu0 0.0
    %704 = vmatprep.subr.mxu0 0.0
    %705 = vmatpush2.msra.mxu0 0.0
    %706 = vmatprep.subr.mxu0 0.0
    %707 = vmatpush2.msra.mxu0 0.0
    %708 = vmatprep.subr.mxu0 0.0
    %709 = vmatpush2.msra.mxu0 0.0
    %710 = vmatprep.subr.mxu0 0.0
    %711 = vmatpush2.msra.mxu0 0.0
    %712 = vmatprep.subr.mxu0 0.0
    %713 = vmatpush2.msra.mxu0 0.0
    %714 = vmatprep.mubr.f32.mxu0 0.0
    %715 = vmatmul.mubr.f32.gmra.mxu0 %v603
    %v716 = vpop.f32.mrf.mxu0
    %v717 = vadd.f32 %v600, %v716
    %v718 = vpop.f32.mrf.mxu0
    %719 = vmatprep.mubr.f32.mxu0 0.0
    %720 = vmatmul.mubr.f32.gmra.mxu0 %v606
    %v721 = vpop.f32.mrf.mxu0
    %v722 = vadd.f32 %v600, %v721
    %v723 = vpop.f32.mrf.mxu0
    %724 = vmatprep.mubr.f32.mxu0 0.0
    %725 = vmatmul.mubr.f32.gmra.mxu0 %v609
    %v726 = vpop.f32.mrf.mxu0
    %v727 = vadd.f32 %v600, %v726
    %v728 = vpop.f32.mrf.mxu0
    %729 = vmatprep.mubr.f32.mxu0 0.0
    %730 = vmatmul.mubr.f32.gmra.mxu0 %v612
    %v731 = vpop.f32.mrf.mxu0
    %v732 = vadd.f32 %v600, %v731
    %v733 = vpop.f32.mrf.mxu0
    %734 = vmatprep.mubr.f32.mxu0 0.0
    %735 = vmatmul.mubr.f32.gmra.mxu0 %v615
    %v736 = vpop.f32.mrf.mxu0
    %v737 = vadd.f32 %v600, %v736
    %v738 = vpop.f32.mrf.mxu0
    %739 = vmatprep.mubr.f32.mxu0 0.0
    %740 = vmatmul.mubr.f32.gmra.mxu0 %v618
    %v741 = vpop.f32.mrf.mxu0
    %v742 = vadd.f32 %v600, %v741
    %v743 = vpop.f32.mrf.mxu0
    %744 = vmatprep.mubr.f32.mxu0 0.0
    %745 = vmatmul.mubr.f32.gmra.mxu0 %v621
    %v746 = vpop.f32.mrf.mxu0
    %v747 = vadd.f32 %v600, %v746
    %v748 = vpop.f32.mrf.mxu0
    %749 = vmatprep.mubr.f32.mxu0 0.0
    %750 = vmatmul.mubr.f32.gmra.mxu0 %v624
    %v751 = vpop.f32.mrf.mxu0
    %v752 = vadd.f32 %v600, %v751
    %v753 = vpop.f32.mrf.mxu0
    %754 = vmatprep.mubr.f32.mxu0 0.0
    %755 = vmatmul.mubr.f32.gmra.mxu0 %v627
    %v756 = vpop.f32.mrf.mxu0
    %v757 = vadd.f32 %v600, %v756
    %v758 = vpop.f32.mrf.mxu0
    %759 = vmatprep.mubr.f32.mxu0 0.0
    %760 = vmatmul.mubr.f32.gmra.mxu0 %v630
    %v761 = vpop.f32.mrf.mxu0
    %v762 = vadd.f32 %v600, %v761
    %v763 = vpop.f32.mrf.mxu0
    %764 = vmatprep.mubr.f32.mxu0 0.0
    %765 = vmatmul.mubr.f32.gmra.mxu0 %v633
    %v766 = vpop.f32.mrf.mxu0
    %v767 = vadd.f32 %v600, %v766
    %v768 = vpop.f32.mrf.mxu0
    %769 = vmatprep.mubr.f32.mxu0 0.0
    %770 = vmatmul.mubr.f32.gmra.mxu0 %v636
    %v771 = vpop.f32.mrf.mxu0
    %v772 = vadd.f32 %v600, %v771
    %v773 = vpop.f32.mrf.mxu0
    %774 = vmatprep.mubr.f32.mxu0 0.0
    %775 = vmatmul.mubr.f32.gmra.mxu0 %v639
    %v776 = vpop.f32.mrf.mxu0
    %v777 = vadd.f32 %v600, %v776
    %v778 = vpop.f32.mrf.mxu0
    %779 = vmatprep.mubr.f32.mxu0 0.0
    %780 = vmatmul.mubr.f32.gmra.mxu0 %v642
    %v781 = vpop.f32.mrf.mxu0
    %v782 = vadd.f32 %v600, %v781
    %v783 = vpop.f32.mrf.mxu0
    %784 = vmatprep.mubr.f32.mxu0 0.0
    %785 = vmatmul.mubr.f32.gmra.mxu0 %v645
    %v786 = vpop.f32.mrf.mxu0
    %v787 = vadd.f32 %v600, %v786
    %v788 = vpop.f32.mrf.mxu0
    %789 = vmatprep.mubr.f32.mxu0 0.0
    %790 = vmatmul.mubr.f32.gmra.mxu0 %v648
    %v791 = vpop.f32.mrf.mxu0
    %v792 = vadd.f32 %v600, %v791
    %v793 = vpop.f32.mrf.mxu0
    %794 = vdwg.mxu0
    %795 = vmax.xlane.f32.xlu0 %v717
    %v796 = vpop.xlane.xlu0 %795
    %797 = vmax.xlane.f32.xlu0 %v722
    %v798 = vpop.xlane.xlu0 %797
    %799 = vmax.xlane.f32.xlu0 %v727
    %v800 = vpop.xlane.xlu0 %799
    %801 = vmax.xlane.f32.xlu0 %v732
    %v802 = vpop.xlane.xlu0 %801
    %803 = vmax.xlane.f32.xlu0 %v737
    %v804 = vpop.xlane.xlu0 %803
    %805 = vmax.xlane.f32.xlu0 %v742
    %v806 = vpop.xlane.xlu0 %805
    %807 = vmax.xlane.f32.xlu0 %v747
    %v808 = vpop.xlane.xlu0 %807
    %809 = vmax.xlane.f32.xlu0 %v752
    %v810 = vpop.xlane.xlu0 %809
    %811 = vmax.xlane.f32.xlu0 %v757
    %v812 = vpop.xlane.xlu0 %811
    %813 = vmax.xlane.f32.xlu0 %v762
    %v814 = vpop.xlane.xlu0 %813
    %815 = vmax.xlane.f32.xlu0 %v767
    %v816 = vpop.xlane.xlu0 %815
    %817 = vmax.xlane.f32.xlu0 %v772
    %v818 = vpop.xlane.xlu0 %817
    %819 = vmax.xlane.f32.xlu0 %v777
    %v820 = vpop.xlane.xlu0 %819
    %821 = vmax.xlane.f32.xlu0 %v782
    %v822 = vpop.xlane.xlu0 %821
    %823 = vmax.xlane.f32.xlu0 %v787
    %v824 = vpop.xlane.xlu0 %823
    %825 = vmax.xlane.f32.xlu0 %v792
    %v826 = vpop.xlane.xlu0 %825
    %v827 = vsub.f32 %v717, %v796
    %v828 = vsub.f32 %v722, %v798
    %v829 = vsub.f32 %v727, %v800
    %v830 = vsub.f32 %v732, %v802
    %v831 = vsub.f32 %v737, %v804
    %v832 = vsub.f32 %v742, %v806
    %v833 = vsub.f32 %v747, %v808
    %v834 = vsub.f32 %v752, %v810
    %v835 = vsub.f32 %v757, %v812
    %v836 = vsub.f32 %v762, %v814
    %v837 = vsub.f32 %v767, %v816
    %v838 = vsub.f32 %v772, %v818
    %v839 = vsub.f32 %v777, %v820
    %v840 = vsub.f32 %v782, %v822
    %v841 = vsub.f32 %v787, %v824
    %v842 = vsub.f32 %v792, %v826
    %v843 = vmul.f32 %v827, 1.442695
    %v844 = vpow.pop %v843
    %v845 = vmul.f32 %v828, 1.442695
    %v846 = vpow.pop %v845
    %v847 = vmul.f32 %v829, 1.442695
    %v848 = vpow.pop %v847
    %v849 = vmul.f32 %v830, 1.442695
    %v850 = vpow.pop %v849
    %v851 = vmul.f32 %v831, 1.442695
    %v852 = vpow.pop %v851
    %v853 = vmul.f32 %v832, 1.442695
    %v854 = vpow.pop %v853
    %v855 = vmul.f32 %v833, 1.442695
    %v856 = vpow.pop %v855
    %v857 = vmul.f32 %v834, 1.442695
    %v858 = vpow.pop %v857
    %v859 = vmul.f32 %v835, 1.442695
    %v860 = vpow.pop %v859
    %v861 = vmul.f32 %v836, 1.442695
    %v862 = vpow.pop %v861
    %v863 = vmul.f32 %v837, 1.442695
    %v864 = vpow.pop %v863
    %v865 = vmul.f32 %v838, 1.442695
    %v866 = vpow.pop %v865
    %v867 = vmul.f32 %v839, 1.442695
    %v868 = vpow.pop %v867
    %v869 = vmul.f32 %v840, 1.442695
    %v870 = vpow.pop %v869
    %v871 = vmul.f32 %v841, 1.442695
    %v872 = vpow.pop %v871
    %v873 = vmul.f32 %v842, 1.442695
    %v874 = vpow.pop %v873
    %v875 = vlaneseq
    %v876 = vand.u32 %v875, 127
    %vm877 = vcmp.ge.s32.totalorder %v876, 0
    %vm878 = vcmp.lt.s32.totalorder %v876, 8
    %vm879 = vmand %vm877, %vm878
    %v880 = vsel %vm879, %v844, 0.0
    %v881 = vsel %vm879, %v846, 0.0
    %v882 = vsel %vm879, %v848, 0.0
    %v883 = vsel %vm879, %v850, 0.0
    %v884 = vsel %vm879, %v852, 0.0
    %v885 = vsel %vm879, %v854, 0.0
    %v886 = vsel %vm879, %v856, 0.0
    %v887 = vsel %vm879, %v858, 0.0
    %v888 = vsel %vm879, %v860, 0.0
    %v889 = vsel %vm879, %v862, 0.0
    %v890 = vsel %vm879, %v864, 0.0
    %v891 = vsel %vm879, %v866, 0.0
    %v892 = vsel %vm879, %v868, 0.0
    %v893 = vsel %vm879, %v870, 0.0
    %v894 = vsel %vm879, %v872, 0.0
    %v895 = vsel %vm879, %v874, 0.0
    %896 = vadd.xlane.f32.xlu0 %v880
    %v897 = vpop.xlane.xlu0 %896
    %898 = vadd.xlane.f32.xlu0 %v881
    %v899 = vpop.xlane.xlu0 %898
    %900 = vadd.xlane.f32.xlu0 %v882
    %v901 = vpop.xlane.xlu0 %900
    %902 = vadd.xlane.f32.xlu0 %v883
    %v903 = vpop.xlane.xlu0 %902
    %904 = vadd.xlane.f32.xlu0 %v884
    %v905 = vpop.xlane.xlu0 %904
    %906 = vadd.xlane.f32.xlu0 %v885
    %v907 = vpop.xlane.xlu0 %906
    %908 = vadd.xlane.f32.xlu0 %v886
    %v909 = vpop.xlane.xlu0 %908
    %910 = vadd.xlane.f32.xlu0 %v887
    %v911 = vpop.xlane.xlu0 %910
    %912 = vadd.xlane.f32.xlu0 %v888
    %v913 = vpop.xlane.xlu0 %912
    %914 = vadd.xlane.f32.xlu0 %v889
    %v915 = vpop.xlane.xlu0 %914
    %916 = vadd.xlane.f32.xlu0 %v890
    %v917 = vpop.xlane.xlu0 %916
    %918 = vadd.xlane.f32.xlu0 %v891
    %v919 = vpop.xlane.xlu0 %918
    %920 = vadd.xlane.f32.xlu0 %v892
    %v921 = vpop.xlane.xlu0 %920
    %922 = vadd.xlane.f32.xlu0 %v893
    %v923 = vpop.xlane.xlu0 %922
    %924 = vadd.xlane.f32.xlu0 %v894
    %v925 = vpop.xlane.xlu0 %924
    %926 = vadd.xlane.f32.xlu0 %v895
    %v927 = vpop.xlane.xlu0 %926
    %v928 = vrcp.pop %v897
    %v929 = vrcp.pop %v899
    %v930 = vrcp.pop %v901
    %v931 = vrcp.pop %v903
    %v932 = vrcp.pop %v905
    %v933 = vrcp.pop %v907
    %v934 = vrcp.pop %v909
    %v935 = vrcp.pop %v911
    %v936 = vrcp.pop %v913
    %v937 = vrcp.pop %v915
    %v938 = vrcp.pop %v917
    %v939 = vrcp.pop %v919
    %v940 = vrcp.pop %v921
    %v941 = vrcp.pop %v923
    %v942 = vrcp.pop %v925
    %v943 = vrcp.pop %v927
    %v944 = vmul.f32 %v844, %v928
    %v945 = vmul.f32 %v846, %v929
    %v946 = vmul.f32 %v848, %v930
    %v947 = vmul.f32 %v850, %v931
    %v948 = vmul.f32 %v852, %v932
    %v949 = vmul.f32 %v854, %v933
    %v950 = vmul.f32 %v856, %v934
    %v951 = vmul.f32 %v858, %v935
    %v952 = vmul.f32 %v860, %v936
    %v953 = vmul.f32 %v862, %v937
    %v954 = vmul.f32 %v864, %v938
    %v955 = vmul.f32 %v866, %v939
    %v956 = vmul.f32 %v868, %v940
    %v957 = vmul.f32 %v870, %v941
    %v958 = vmul.f32 %v872, %v942
    %v959 = vmul.f32 %v874, %v943
    %960 = vst [vmem:[#allocation2] sm:$0xff] %v944
    %961 = vst [vmem:[#allocation2 + $0x8] sm:$0xff] %v945
    %962 = vst [vmem:[#allocation2 + $0x10] sm:$0xff] %v946
    %963 = vst [vmem:[#allocation2 + $0x18] sm:$0xff] %v947
    %964 = vst [vmem:[#allocation2 + $0x20] sm:$0xff] %v948
    %965 = vst [vmem:[#allocation2 + $0x28] sm:$0xff] %v949
    %966 = vst [vmem:[#allocation2 + $0x30] sm:$0xff] %v950
    %967 = vst [vmem:[#allocation2 + $0x38] sm:$0xff] %v951
    %968 = vst [vmem:[#allocation2 + $0x40] sm:$0xff] %v952
    %969 = vst [vmem:[#allocation2 + $0x48] sm:$0xff] %v953
    %970 = vst [vmem:[#allocation2 + $0x50] sm:$0xff] %v954
    %971 = vst [vmem:[#allocation2 + $0x58] sm:$0xff] %v955
    %972 = vst [vmem:[#allocation2 + $0x60] sm:$0xff] %v956
    %973 = vst [vmem:[#allocation2 + $0x68] sm:$0xff] %v957
    %974 = vst [vmem:[#allocation2 + $0x70] sm:$0xff] %v958
    %975 = vst [vmem:[#allocation2 + $0x78] sm:$0xff] %v959
    // Predicated region
    $region26: #{tpu_custom_call.1} parent=1 // pred_check
      _
    $region27: #{tpu_custom_call.1} parent=1 // pred_check_branch
      %977 = sbr.rel (0) target = $region29
    $region28: #{tpu_custom_call.1} parent=1 // pred_region
      %s979 = ssub.s32 2048, 2048
      %980 = vsyncadd [#allocation3], %s979
      %s981 = sshll.u32 [#allocation2], 4
      %s982 = int_to_ptr.vmem [resolvable:$true] %s981
      %987 = dma.vmem_to_hbm [thread:$0]  %s982, 2048, %s6, [#allocation3], 128, 128, 8
    $region29: #{tpu_custom_call.1} parent=1 // pred_fallthru
      _
    // Predicated region
    $region30: #{tpu_custom_call.1} parent=1 // pred_check
      _
    $region31: #{tpu_custom_call.1} parent=1 // pred_check_branch
      %989 = sbr.rel (0) target = $region33
    $region32: #{tpu_custom_call.1} parent=1 // pred_region
      %990 = dma.done [#allocation3], 2048
    $region33: #{tpu_custom_call.1} parent=1 // pred_fallthru
      _
    %991 = vsyncpa [#allocation3], 1

</llo_original>
